<compile_context>
chip_gen: v5e
topology: v5e:2x2
jax: 0.10.0
libtpu: 0.0.40
codegen_flags: <defaults>
</compile_context>

<pallas_src>
import jax
import jax.numpy as jnp
from jax import lax
from jax.experimental import pallas as pl
from jax.experimental.pallas import tpu as pltpu


def _round_up(v, m):
    return (v + m - 1) // m * m


def _parallelogram_kernel(x_ref, r_ref, o_ref):
    # r_ref / o_ref: (TB, TL) f32, channels interleaved along lanes:
    #   lane 2k   -> r1 / out_x of sample k
    #   lane 2k+1 -> r2 / out_y of sample k
    # x_ref: (TB, 6) f32 = [v1x, v1y, d21x, d21y, d32x, d32y] per batch row.
    r = r_ref[...]
    tl = r.shape[1]

    lane = lax.broadcasted_iota(jnp.int32, r.shape, 1)
    even = (lane & 1) == 0

    # De-interleave via lane rotation (XLU slot, off the VPU) + parity select:
    # broadcast r1 / r2 to both lanes of their (x, y) pair.
    r1 = jnp.where(even, r, pltpu.roll(r, shift=1, axis=1))        # odd lane j uses r[j-1]
    r2 = jnp.where(even, pltpu.roll(r, shift=tl - 1, axis=1), r)   # even lane j uses r[j+1]

    s = jnp.sqrt(r1)
    sr2 = s * r2

    xb = x_ref[...]                                    # (TB, 6)
    v1 = jnp.where(even, xb[:, 0:1], xb[:, 1:2])       # (TB, TL), interleaved x/y components
    d21 = jnp.where(even, xb[:, 2:3], xb[:, 3:4])
    d32 = jnp.where(even, xb[:, 4:5], xb[:, 5:6])

    # (1-s)*v1 + (1-r2)*s*v2 + s*r2*v3  ==  v1 + s*(v2-v1) + s*r2*(v3-v2)
    o_ref[...] = v1 + s * d21 + sr2 * d32


def parallelogram_parametrization(r, x, *, max_tb=256,
                                  target_block_bytes=2 * 1024 * 1024):
    """r: (b, n, 2) f32, x: (b, 3, 2) f32 -> (b, n, 2) f32."""
    b, n, c2 = r.shape
    b1, t1, c1 = x.shape
    assert t1 == 3 and c1 == 2 and b1 == b and c2 == 2, (x.shape, r.shape)

    L = 2 * n
    # Free reshape (no data movement): interleaved channel-along-lane view.
    r_flat = r.reshape(b, L)          # [r1_0, r2_0, r1_1, r2_1, ...] per row

    # Pre-reduce the tiny vertex tensor (trivial (b, 6) XLA op) so the kernel
    # skips two full-tile subtracts per grid step.
    v1 = x[:, 0, :]
    d21 = x[:, 1, :] - x[:, 0, :]
    d32 = x[:, 2, :] - x[:, 1, :]
    x_flat = jnp.concatenate([v1, d21, d32], axis=-1)        # (b, 6)

    # Row tile: either the full batch (always a legal block dim) or a large
    # multiple-of-8 tile with a Pallas-handled ragged last row block.
    tb = b if b <= max_tb else max_tb

    lane_padded = False
    if L < 128:
        # Tiny problem: one cheap lane pad so the XLU roll runs on a 128-lane
        # tile (zero pad -> sqrt(0)=0, no NaNs). Copies here are negligible.
        L_work = 128
        r_flat = jnp.pad(r_flat, ((0, 0), (0, 128 - L)))
        lane_padded = True
        tl = 128
    else:
        L_work = L
        # Lane tile: budget-driven (VMEM rounds sublanes up to 8), a multiple
        # of 128, never larger than the floor-128 extent of L. Ragged last
        # lane block is handled by Pallas -> no wrapper pad / slice copies.
        sub_rows = _round_up(tb, 8)
        tl = (target_block_bytes // (sub_rows * 4)) // 128 * 128
        tl = max(128, min(tl, (L // 128) * 128))

    grid_rows = pl.cdiv(b, tb)
    grid_lanes = pl.cdiv(L_work, tl)

    # v7x has 2 TensorCores: split a single-block grid along lanes so both
    # cores get work (costs one extra ~0.35us grid step on single-TC chips).
    if grid_rows * grid_lanes == 1 and L_work >= 256:
        tl = ((L_work + 255) // 256) * 128            # ceil(L/2) rounded to 128
        grid_lanes = pl.cdiv(L_work, tl)

    grid = (grid_rows, grid_lanes)

    out_flat = pl.pallas_call(
        _parallelogram_kernel,
        out_shape=jax.ShapeDtypeStruct((b, L_work), r.dtype),
        grid_spec=pl.GridSpec(
            grid=grid,
            in_specs=[
                pl.BlockSpec((tb, 6), lambda i, j: (i, 0)),
                pl.BlockSpec((tb, tl), lambda i, j: (i, j)),
            ],
            out_specs=pl.BlockSpec((tb, tl), lambda i, j: (i, j)),
        ),
        compiler_params=pltpu.CompilerParams(
            dimension_semantics=("parallel", "parallel"),
            vmem_limit_bytes=32 * 1024 * 1024),
    )(x_flat, r_flat)

    if lane_padded:
        out_flat = out_flat[:, :L]    # tiny slice, only taken when 2n < 128
    return out_flat.reshape(b, n, 2)


def _reference(r, x):
    # Pure-jnp replica of the torch forward (for verification).
    s = jnp.sqrt(r[:, :, 0:1])
    r2 = r[:, :, 1:2]
    v1 = x[:, 0:1, :]
    v2 = x[:, 1:2, :]
    v3 = x[:, 2:3, :]
    return (1.0 - s) * v1 + (1.0 - r2) * s * v2 + s * r2 * v3


if __name__ == "__main__":
    key = jax.random.PRNGKey(0)

    # Test 1: tiny shape (takes the lane-pad path).
    k_r, k_x, k_r2, k_x2 = jax.random.split(key, 4)
    b, n = 2, 8
    r = jax.random.uniform(k_r, (b, n, 2), dtype=jnp.float32)   # r in [0, 1)
    x = jax.random.normal(k_x, (b, 3, 2), dtype=jnp.float32)
    out = jax.block_until_ready(parallelogram_parametrization(r, x))
    ref = _reference(r, x)
    assert out.shape == (b, n, 2)
    assert jnp.allclose(out, ref, atol=1e-5, rtol=1e-5), "mismatch vs reference (small)"

    # Test 2: non-multiple shape exercising the ragged last lane block path.
    b2, n2 = 4, 300                                             # L = 600 (not /128)
    r_b = jax.random.uniform(k_r2, (b2, n2, 2), dtype=jnp.float32)
    x_b = jax.random.normal(k_x2, (b2, 3, 2), dtype=jnp.float32)
    out_b = jax.block_until_ready(parallelogram_parametrization(r_b, x_b))
    ref_b = _reference(r_b, x_b)
    assert out_b.shape == (b2, n2, 2)
    assert jnp.allclose(out_b, ref_b, atol=1e-5, rtol=1e-5), "mismatch vs reference (ragged)"

    print("KERNEL_OK")
</pallas_src>

<mosaic_0001>
module attributes {stable_mosaic.version = 11 : i64} {
  func.func @_parallelogram_kernel(%arg0: i32, %arg1: i32, %arg2: memref<2x6xf32, #tpu.memory_space<vmem>>, %arg3: memref<2x128xf32, #tpu.memory_space<vmem>>, %arg4: memref<2x128xf32, #tpu.memory_space<vmem>>) attributes {dimension_semantics = [#tpu.dimension_semantics<parallel>, #tpu.dimension_semantics<parallel>], iteration_bounds = array<i64: 1, 1>, scalar_prefetch = 0 : i64, scratch_operands = 0 : i64, tpu.core_type = #tpu.core_type<tc>, window_params = [{transform_indices = @transform_0, window_bounds = array<i64: 2, 6>}, {transform_indices = @transform_1, window_bounds = array<i64: 2, 128>}, {transform_indices = @transform_2, window_bounds = array<i64: 2, 128>}]} {
    %c0 = arith.constant 0 : index
    %c0_0 = arith.constant 0 : index
    %0 = vector.load %arg3[%c0, %c0_0] : memref<2x128xf32, #tpu.memory_space<vmem>>, vector<2x128xf32>
    %1 = tpu.iota {dimensions = array<i32: 1>} : vector<2x128xi32>
    %c1_i32 = arith.constant 1 : i32
    %2 = vector.broadcast %c1_i32 : i32 to vector<2x128xi32>
    %3 = arith.andi %1, %2 : vector<2x128xi32>
    %c0_i32 = arith.constant 0 : i32
    %4 = vector.broadcast %c0_i32 : i32 to vector<2x128xi32>
    %5 = arith.cmpi eq, %3, %4 : vector<2x128xi32>
    %c1_i32_1 = arith.constant 1 : i32
    %6 = tpu.dynamic_rotate %0 by %c1_i32_1 dim 1 : vector<2x128xf32>, i32 -> vector<2x128xf32>
    %7 = arith.select %5, %0, %6 : vector<2x128xi1>, vector<2x128xf32>
    %c127_i32 = arith.constant 127 : i32
    %8 = tpu.dynamic_rotate %0 by %c127_i32 dim 1 : vector<2x128xf32>, i32 -> vector<2x128xf32>
    %9 = arith.select %5, %8, %0 : vector<2x128xi1>, vector<2x128xf32>
    %10 = math.sqrt %7 : vector<2x128xf32>
    %11 = arith.mulf %10, %9 : vector<2x128xf32>
    %c0_2 = arith.constant 0 : index
    %c0_3 = arith.constant 0 : index
    %12 = vector.load %arg2[%c0_2, %c0_3] : memref<2x6xf32, #tpu.memory_space<vmem>>, vector<2x6xf32>
    %13 = vector.extract_strided_slice %12 {offsets = [0, 0], sizes = [2, 1], strides = [1, 1]} : vector<2x6xf32> to vector<2x1xf32>
    %14 = vector.extract_strided_slice %12 {offsets = [0, 1], sizes = [2, 1], strides = [1, 1]} : vector<2x6xf32> to vector<2x1xf32>
    %15 = vector.shape_cast %13 : vector<2x1xf32> to vector<2x1xf32>
    %16 = vector.broadcast %15 : vector<2x1xf32> to vector<2x128xf32>
    %17 = vector.shape_cast %14 : vector<2x1xf32> to vector<2x1xf32>
    %18 = vector.broadcast %17 : vector<2x1xf32> to vector<2x128xf32>
    %19 = arith.select %5, %16, %18 : vector<2x128xi1>, vector<2x128xf32>
    %20 = vector.extract_strided_slice %12 {offsets = [0, 2], sizes = [2, 1], strides = [1, 1]} : vector<2x6xf32> to vector<2x1xf32>
    %21 = vector.extract_strided_slice %12 {offsets = [0, 3], sizes = [2, 1], strides = [1, 1]} : vector<2x6xf32> to vector<2x1xf32>
    %22 = vector.shape_cast %20 : vector<2x1xf32> to vector<2x1xf32>
    %23 = vector.broadcast %22 : vector<2x1xf32> to vector<2x128xf32>
    %24 = vector.shape_cast %21 : vector<2x1xf32> to vector<2x1xf32>
    %25 = vector.broadcast %24 : vector<2x1xf32> to vector<2x128xf32>
    %26 = arith.select %5, %23, %25 : vector<2x128xi1>, vector<2x128xf32>
    %27 = vector.extract_strided_slice %12 {offsets = [0, 4], sizes = [2, 1], strides = [1, 1]} : vector<2x6xf32> to vector<2x1xf32>
    %28 = vector.extract_strided_slice %12 {offsets = [0, 5], sizes = [2, 1], strides = [1, 1]} : vector<2x6xf32> to vector<2x1xf32>
    %29 = vector.shape_cast %27 : vector<2x1xf32> to vector<2x1xf32>
    %30 = vector.broadcast %29 : vector<2x1xf32> to vector<2x128xf32>
    %31 = vector.shape_cast %28 : vector<2x1xf32> to vector<2x1xf32>
    %32 = vector.broadcast %31 : vector<2x1xf32> to vector<2x128xf32>
    %33 = arith.select %5, %30, %32 : vector<2x128xi1>, vector<2x128xf32>
    %34 = arith.mulf %10, %26 : vector<2x128xf32>
    %35 = arith.addf %19, %34 : vector<2x128xf32>
    %36 = arith.mulf %11, %33 : vector<2x128xf32>
    %37 = arith.addf %35, %36 : vector<2x128xf32>
    %c0_4 = arith.constant 0 : index
    %c0_5 = arith.constant 0 : index
    %38 = vector.load %arg4[%c0_4, %c0_5] : memref<2x128xf32, #tpu.memory_space<vmem>>, vector<2x128xf32>
    tpu.vector_store %arg4[%c0_4, %c0_5], %37 {strides = array<i32>} : memref<2x128xf32, #tpu.memory_space<vmem>>, vector<2x128xf32>,
    return
  }
  func.func @transform_0(%arg0: i32, %arg1: i32) -> (i32, i32) {
    %c0_i32 = arith.constant 0 : i32
    %c0_i32_0 = arith.constant 0 : i32
    return %arg0, %c0_i32 : i32, i32
  }
  func.func @transform_1(%arg0: i32, %arg1: i32) -> (i32, i32) {
    %c0_i32 = arith.constant 0 : i32
    return %arg0, %arg1 : i32, i32
  }
  func.func @transform_2(%arg0: i32, %arg1: i32) -> (i32, i32) {
    %c0_i32 = arith.constant 0 : i32
    return %arg0, %arg1 : i32, i32
  }
}

</mosaic_0001>

<llo_original>
// kernel: tpu_custom_call.1
$region0: #{tpu_custom_call.1}
  #allocation0 [shape = 'u32[]', space=smem, size = 0x4, offset = 0x4, fixed_abs, tag = 'smem constant byte address 0x4 - core index']
  #allocation1 [shape = 'u32[72,128]{1,0:T(1,128)}', space=vmem, size = 0x9000, scoped, tag = 'internal scratch']
  %s0 = inlined_call_operand.hbm [shape: f32[2,6], index: 0, kind: input, shape index: {}]
  %s1 = inlined_call_operand.hbm [shape: f32[2,128], index: 1, kind: input, shape index: {}]
  %s2 = inlined_call_operand.hbm [shape: f32[2,128], index: 2, kind: output, shape index: {}]
  %s3 = sld [smem:[#allocation0]]
  $region26: #{tpu_custom_call.1} parent=0
    _
  %s5 = ssub.s32 1, %s3
  %s6 = scalar_select 0, %s5, %s3
  $region1: #{tpu_custom_call.1} parent=0
    #allocation2 [shape = 'u8[1024]{0}', space=vmem, size = 0x400, scoped, tag = 'input window, operand 0, single buffered']
    #allocation3 [shape = 's32[1]{0}', space=sflag, size = 0x4, scoped, tag = 'scoped memory for tpu_custom_call.1']
    #allocation4 [shape = 's32[1]{0}', space=sflag, size = 0x4, scoped, tag = 'scoped memory for tpu_custom_call.1']
    #allocation5 [shape = 'u8[1024]{0}', space=vmem, size = 0x400, scoped, tag = 'input window, operand 1, single buffered']
    #allocation6 [shape = 's32[1]{0}', space=sflag, size = 0x4, scoped, tag = 'scoped memory for tpu_custom_call.1']
    #allocation7 [shape = 'u8[1024]{0}', space=vmem, size = 0x400, scoped, tag = 'output window, operand 0, single buffered']
    %7 = vsyncpa [#allocation3], 0
    %8 = vsyncpa [#allocation6], 0
    %9 = vsyncpa [#allocation4], 0
    // Predicated region
    $region2: #{tpu_custom_call.1} parent=1 // pred_check
      _
    $region3: #{tpu_custom_call.1} parent=1 // pred_check_branch
      %11 = sbr.rel (0) target = $region5
    $region4: #{tpu_custom_call.1} parent=1 // pred_region
      %13 = vsyncadd [#allocation3], 0
      %s15 = sshll.u32 %s0, 4
      %s16 = int_to_ptr.hbm [resolvable:$true] %s15
      %s17 = sshll.u32 [#allocation2], 4
      %s18 = int_to_ptr.vmem [resolvable:$true] %s17
      %20 = dma.hbm_to_vmem [thread:$0]  %s16, 32, %s18, [#allocation3]
    $region5: #{tpu_custom_call.1} parent=1 // pred_fallthru
      _
    // Predicated region
    $region6: #{tpu_custom_call.1} parent=1 // pred_check
      _
    $region7: #{tpu_custom_call.1} parent=1 // pred_check_branch
      %22 = sbr.rel (0) target = $region9
    $region8: #{tpu_custom_call.1} parent=1 // pred_region
      %24 = vsyncadd [#allocation6], 0
      %s26 = sshll.u32 %s1, 4
      %s27 = int_to_ptr.hbm [resolvable:$true] %s26
      %s28 = sshll.u32 [#allocation5], 4
      %s29 = int_to_ptr.vmem [resolvable:$true] %s28
      %31 = dma.hbm_to_vmem [thread:$0]  %s27, 32, %s29, [#allocation6]
    $region9: #{tpu_custom_call.1} parent=1 // pred_fallthru
      _
    // Predicated region
    $region10: #{tpu_custom_call.1} parent=1 // pred_check
      _
    $region11: #{tpu_custom_call.1} parent=1 // pred_check_branch
      %33 = sbr.rel (0) target = $region13
    $region12: #{tpu_custom_call.1} parent=1 // pred_region
      %35 = dma.done [#allocation3], 32
    $region13: #{tpu_custom_call.1} parent=1 // pred_fallthru
      _
    // Predicated region
    $region14: #{tpu_custom_call.1} parent=1 // pred_check
      _
    $region15: #{tpu_custom_call.1} parent=1 // pred_check_branch
      %37 = sbr.rel (0) target = $region17
    $region16: #{tpu_custom_call.1} parent=1 // pred_region
      %39 = dma.done [#allocation6], 32
    $region17: #{tpu_custom_call.1} parent=1 // pred_fallthru
      _
    %v40 = vld [vmem:[#allocation5] sm:$0x3]
    %v41 = vlaneseq
    %v42 = vand.u32 %v41, 127
    %v43 = vand.u32 %v42, 1
    %vm44 = vcmp.eq.s32.totalorder %v43, 0
    %45 = vrot.lane.b32.xlu0 %v40, 1
    %v46 = vpop.permute.xlu0 %45
    %v47 = vsel %vm44, %v40, %v46
    %48 = vrot.lane.b32.xlu0 %v40, 127
    %v49 = vpop.permute.xlu0 %48
    %v50 = vsel %vm44, %v49, %v40
    %v51 = vrsqrt.pop %v47
    %v52 = vmul.f32 %v51, %v47
    %v53 = vmul.f32 %v52, %v51
    %v54 = vmul.f32 0.5, %v53
    %v55 = vsub.f32 1.5, %v54
    %v56 = vmul.f32 %v51, %v55
    %v57 = vmul.f32 %v47, %v56
    %vm58 = vcmp.eq.f32.partialorder %v47, inf
    %v59 = vsel %vm58, %v47, %v57
    %vm60 = vcmp.eq.f32.partialorder %v47, 0.0
    %v61 = vand.u32 %v47, 2147483648
    %v62 = vsel %vm60, %v61, %v59
    %v63 = vmul.f32 %v62, %v50
    %v64 = vld [vmem:[#allocation2] sm:$0x3]
    %66 = vset.pattern.permute.xlu0 0
    %67 = vperm.xlu0 %66, %v64
    %v68 = vpop.permute.xlu0 %67
    %70 = vset.pattern.permute.xlu0 1
    %71 = vperm.xlu0 %70, %v64
    %v72 = vpop.permute.xlu0 %71
    %v74 = vsel %vm44, %v68, %v72
    %75 = vset.pattern.permute.xlu0 2
    %76 = vperm.xlu0 %75, %v64
    %v77 = vpop.permute.xlu0 %76
    %79 = vset.pattern.permute.xlu0 3
    %80 = vperm.xlu0 %79, %v64
    %v81 = vpop.permute.xlu0 %80
    %v83 = vsel %vm44, %v77, %v81
    %84 = vset.pattern.permute.xlu0 4
    %85 = vperm.xlu0 %84, %v64
    %v86 = vpop.permute.xlu0 %85
    %88 = vset.pattern.permute.xlu0 5
    %89 = vperm.xlu0 %88, %v64
    %v90 = vpop.permute.xlu0 %89
    %v92 = vsel %vm44, %v86, %v90
    %v93 = vmul.f32 %v62, %v83
    %v94 = vadd.f32 %v74, %v93
    %v95 = vmul.f32 %v63, %v92
    %v96 = vadd.f32 %v94, %v95
    %97 = vst [vmem:[#allocation7] sm:$0x3] %v96
    // Predicated region
    $region18: #{tpu_custom_call.1} parent=1 // pred_check
      _
    $region19: #{tpu_custom_call.1} parent=1 // pred_check_branch
      %99 = sbr.rel (0) target = $region21
    $region20: #{tpu_custom_call.1} parent=1 // pred_region
      %101 = vsyncadd [#allocation4], 0
      %s103 = sshll.u32 [#allocation7], 4
      %s104 = int_to_ptr.vmem [resolvable:$true] %s103
      %s105 = sshll.u32 %s2, 4
      %s106 = int_to_ptr.hbm [resolvable:$true] %s105
      %108 = dma.vmem_to_hbm [thread:$0]  %s104, 32, %s106, [#allocation4]
    $region21: #{tpu_custom_call.1} parent=1 // pred_fallthru
      _
    // Predicated region
    $region22: #{tpu_custom_call.1} parent=1 // pred_check
      _
    $region23: #{tpu_custom_call.1} parent=1 // pred_check_branch
      %110 = sbr.rel (0) target = $region25
    $region24: #{tpu_custom_call.1} parent=1 // pred_region
      %112 = dma.done [#allocation4], 32
    $region25: #{tpu_custom_call.1} parent=1 // pred_fallthru
      _
    %113 = vsyncpa [#allocation3], 1
    %114 = vsyncpa [#allocation6], 1
    %115 = vsyncpa [#allocation4], 1

</llo_original>
